<compile_context>
chip_gen: v7x
topology: tpu7x:2x2x1
jax: 0.10.0
libtpu: 0.0.40
codegen_flags: <defaults>
</compile_context>

<pallas_src>
import jax
import jax.numpy as jnp
from jax.experimental import pallas as pl
from jax.experimental.pallas import tpu as pltpu

# ---------------- synthetic encoder config (small shapes) ----------------
VOCAB = 64       # synthetic vocab
SEQ = 8          # sequence length ("context length")
HIDDEN = 32      # embedding / conditioning width
EPS = 1e-5

# Packed parameter-table layout (one DMA):
#   rows [0, VOCAB)            : token embedding table      (VOCAB, HIDDEN)
#   rows [VOCAB, VOCAB + SEQ)  : positional embedding       (SEQ, HIDDEN)
#   row  TAB_GAMMA             : layernorm gamma
#   row  TAB_BETA              : layernorm beta
TAB_GAMMA = VOCAB + SEQ                      # 72
TAB_BETA = TAB_GAMMA + 1                     # 73
TAB_ROWS = ((TAB_BETA + 1 + 7) // 8) * 8     # 80 (sublane-pad to multiple of 8)

# Packed projection layout (one DMA):
#   rows [0, HIDDEN) : projection weight (HIDDEN, HIDDEN)
#   row  HIDDEN      : projection bias
WB_ROWS = ((HIDDEN + 1 + 7) // 8) * 8        # 40


# ------------- Pallas kernel: embed(+pos) + LayerNorm + projection -------------
def _cond_kernel(ids_ref, tab_ref, wb_ref, o_ref):
    # ids_ref: (SEQ, 1)          int32  clamped token ids for one prompt
    # tab_ref: (TAB_ROWS, H)     f32    tok_emb | pos_emb | gamma | beta
    # wb_ref:  (WB_ROWS, H)      f32    projection weight | bias
    # o_ref:   (SEQ, H)          f32    projected conditioning
    ids = ids_ref[...]                                                # (SEQ, 1)

    # Embedding gather AND positional add fused into one MXU matmul:
    #   lhs = [ one_hot(ids) over vocab | I_SEQ ]   (SEQ, VOCAB+SEQ)
    #   rhs = tab rows [0, VOCAB+SEQ)               (VOCAB+SEQ, HIDDEN)
    # The two selector blocks are disjoint (ids < VOCAB, identity cols >= VOCAB),
    # so a single logical_or builds the LHS without any lane concatenation.
    cols = jax.lax.broadcasted_iota(jnp.int32, (SEQ, VOCAB + SEQ), 1)
    rows = jax.lax.broadcasted_iota(jnp.int32, (SEQ, VOCAB + SEQ), 0)
    lhs = jnp.logical_or(cols == ids, cols == rows + VOCAB).astype(jnp.float32)
    x = jnp.dot(lhs, tab_ref[0:VOCAB + SEQ, :],
                preferred_element_type=jnp.float32)                  # (SEQ, HIDDEN)
    # TODO(synk): at real CLIP shapes cast both dot operands to bf16 (f32 acc)
    # for the v6e/v7x MXU; kept f32 here for exact parity at toy shapes.

    # LayerNorm over the hidden (lane) axis; all math stays f32.
    mean = jnp.mean(x, axis=-1, keepdims=True)
    centered = x - mean
    var = jnp.mean(centered * centered, axis=-1, keepdims=True)
    gamma = tab_ref[TAB_GAMMA:TAB_GAMMA + 1, :]
    beta = tab_ref[TAB_BETA:TAB_BETA + 1, :]
    xn = centered * jax.lax.rsqrt(var + EPS) * gamma + beta          # (SEQ, HIDDEN)

    # Projection on the MXU + bias (single VPU add).
    w = wb_ref[0:HIDDEN, :]
    b = wb_ref[HIDDEN:HIDDEN + 1, :]
    o_ref[...] = jnp.dot(xn, w, preferred_element_type=jnp.float32) + b


# One jit for the whole per-prompt path: clamp + reshape + pallas_call + reshape.
@jax.jit
def encode_prompt(token_ids, tab, wb):
    ids2d = jnp.clip(token_ids.astype(jnp.int32), 0, VOCAB - 1).reshape(SEQ, 1)
    y = pl.pallas_call(
        _cond_kernel,
        out_shape=jax.ShapeDtypeStruct((SEQ, HIDDEN), jnp.float32),
        # No grid: whole-array blocks, no 1-step pipeline / double buffering.
        in_specs=[
            pl.BlockSpec(memory_space=pltpu.MemorySpace.VMEM),
            pl.BlockSpec(memory_space=pltpu.MemorySpace.VMEM),
            pl.BlockSpec(memory_space=pltpu.MemorySpace.VMEM),
        ],
        out_specs=pl.BlockSpec(memory_space=pltpu.MemorySpace.VMEM),
    )(ids2d, tab, wb)
    return y.reshape(1, SEQ, HIDDEN)


# ---------------- parameter packing (done once, at model load) ----------------
def pack_params(params):
    tab = jnp.zeros((TAB_ROWS, HIDDEN), jnp.float32)
    tab = tab.at[0:VOCAB].set(params["tok_emb"])
    tab = tab.at[VOCAB:VOCAB + SEQ].set(params["pos_emb"])
    tab = tab.at[TAB_GAMMA].set(params["gamma"].reshape(HIDDEN))
    tab = tab.at[TAB_BETA].set(params["beta"].reshape(HIDDEN))

    wb = jnp.zeros((WB_ROWS, HIDDEN), jnp.float32)
    wb = wb.at[0:HIDDEN].set(params["w"])
    wb = wb.at[HIDDEN].set(params["b"].reshape(HIDDEN))
    return tab, wb


# -------------- StableConditioning (TextPrompt branch) --------------
def build_stable_conditioning(params):
    """Returns forward(token_ids) -> (conditioning, unconditional).

    Mirrors the TextPrompt branch of StableConditioning.forward:
      conditioning  = get_learned_conditioning([txt])
      unconditional = get_learned_conditioning([''])
    The '' (uncond) embedding never changes, so it is computed once here and
    cached instead of re-running the encoder per prompt / per sampling step.
    """
    tab, wb = pack_params(params)
    # TODO(synk): the empty prompt '' is modeled as all-id-0 tokens; a real CLIP
    # tokenizer would produce [BOS, EOS, pad...] — synthetic stand-in only.
    empty_ids = jnp.zeros((SEQ,), dtype=jnp.int32)
    uncond = encode_prompt(empty_ids, tab, wb)          # cached at model load

    def forward(token_ids_cond):
        conditioning = encode_prompt(token_ids_cond, tab, wb)
        # TODO(synk): ImagePrompt branch (CLIP image tower + zeros_like uncond)
        # is not kernelized; only the TextPrompt path is implemented.
        return conditioning, uncond

    return forward


def init_params(key):
    k1, k2, k3, k4 = jax.random.split(key, 4)
    return {
        "tok_emb": jax.random.normal(k1, (VOCAB, HIDDEN), jnp.float32) * 0.02,
        "pos_emb": jax.random.normal(k2, (SEQ, HIDDEN), jnp.float32) * 0.01,
        "w": jax.random.normal(k3, (HIDDEN, HIDDEN), jnp.float32) / jnp.sqrt(HIDDEN),
        "b": jax.random.normal(k4, (1, HIDDEN), jnp.float32) * 0.01,
        "gamma": jnp.ones((1, HIDDEN), jnp.float32),
        "beta": jnp.zeros((1, HIDDEN), jnp.float32),
    }


if __name__ == "__main__":
    key = jax.random.PRNGKey(0)
    params = init_params(key)
    forward = build_stable_conditioning(params)   # packs weights + caches uncond

    # Deterministic "tokenized" prompt.
    token_ids_cond = (jnp.arange(SEQ, dtype=jnp.int32) * 7 + 3) % VOCAB

    cond, uncond = forward(token_ids_cond)
    jax.block_until_ready((cond, uncond))

    assert cond.shape == (1, SEQ, HIDDEN) and uncond.shape == (1, SEQ, HIDDEN)
    assert cond.dtype == jnp.float32 and uncond.dtype == jnp.float32

    # Sanity: pure-JAX reference of the same mini encoder.
    ids = jnp.stack([token_ids_cond, jnp.zeros((SEQ,), jnp.int32)], axis=0)
    x_ref = jnp.take(params["tok_emb"], ids, axis=0) + params["pos_emb"][None]
    mu = x_ref.mean(-1, keepdims=True)
    va = ((x_ref - mu) ** 2).mean(-1, keepdims=True)
    xn_ref = (x_ref - mu) * jax.lax.rsqrt(va + EPS) * params["gamma"] + params["beta"]
    y_ref = xn_ref @ params["w"] + params["b"]
    assert jnp.allclose(jnp.concatenate([cond, uncond], axis=0), y_ref,
                        atol=1e-5, rtol=1e-5)
    print("KERNEL_OK")
</pallas_src>

<mosaic_0001>
module attributes {stable_mosaic.version = 11 : i64} {
  func.func @_cond_kernel(%arg0: memref<8x1xi32, #tpu.memory_space<vmem>>, %arg1: memref<80x32xf32, #tpu.memory_space<vmem>>, %arg2: memref<40x32xf32, #tpu.memory_space<vmem>>, %arg3: memref<8x32xf32, #tpu.memory_space<vmem>>) attributes {dimension_semantics = [], scalar_prefetch = 0 : i64, scratch_operands = 0 : i64, tpu.core_type = #tpu.core_type<tc>} {
    %c0 = arith.constant 0 : index
    %c0_0 = arith.constant 0 : index
    %0 = vector.load %arg0[%c0, %c0_0] : memref<8x1xi32, #tpu.memory_space<vmem>>, vector<8x1xi32>
    %1 = tpu.iota {dimensions = array<i32: 1>} : vector<8x72xi32>
    %2 = tpu.iota {dimensions = array<i32: 0>} : vector<8x72xi32>
    %3 = vector.broadcast %0 : vector<8x1xi32> to vector<8x72xi32>
    %4 = arith.cmpi eq, %1, %3 : vector<8x72xi32>
    %c64_i32 = arith.constant 64 : i32
    %5 = vector.broadcast %c64_i32 : i32 to vector<8x72xi32>
    %6 = arith.addi %2, %5 : vector<8x72xi32>
    %7 = arith.cmpi eq, %1, %6 : vector<8x72xi32>
    %8 = arith.ori %4, %7 : vector<8x72xi1>
    %9 = arith.extui %8 : vector<8x72xi1> to vector<8x72xi32>
    %10 = arith.sitofp %9 : vector<8x72xi32> to vector<8x72xf32>
    %c0_1 = arith.constant 0 : index
    %c0_2 = arith.constant 0 : index
    %11 = vector.load %arg1[%c0_1, %c0_2] : memref<80x32xf32, #tpu.memory_space<vmem>>, vector<72x32xf32>
    %cst = arith.constant dense<0.000000e+00> : vector<8x32xf32>
    %12 = tpu.matmul %10, %11, %cst {dimension_numbers = #tpu.dot_dimension_numbers<[1], [0], [0], [1], [0, 0, 1, 1], [], []>} : vector<8x72xf32>, vector<72x32xf32>, vector<8x32xf32> -> vector<8x32xf32>
    %cst_3 = arith.constant dense<0.000000e+00> : vector<8xf32>
    %13 = vector.multi_reduction <add>, %12, %cst_3 [1] : vector<8x32xf32> to vector<8xf32>
    %14 = vector.shape_cast %13 : vector<8xf32> to vector<8x1xf32>
    %cst_4 = arith.constant 3.200000e+01 : f32
    %15 = vector.broadcast %cst_4 : f32 to vector<8x1xf32>
    %16 = arith.divf %14, %15 : vector<8x1xf32>
    %17 = vector.broadcast %16 : vector<8x1xf32> to vector<8x32xf32>
    %18 = arith.subf %12, %17 : vector<8x32xf32>
    %19 = arith.mulf %18, %18 : vector<8x32xf32>
    %cst_5 = arith.constant dense<0.000000e+00> : vector<8xf32>
    %20 = vector.multi_reduction <add>, %19, %cst_5 [1] : vector<8x32xf32> to vector<8xf32>
    %21 = vector.shape_cast %20 : vector<8xf32> to vector<8x1xf32>
    %cst_6 = arith.constant 3.200000e+01 : f32
    %22 = vector.broadcast %cst_6 : f32 to vector<8x1xf32>
    %23 = arith.divf %21, %22 : vector<8x1xf32>
    %c72 = arith.constant 72 : index
    %c0_7 = arith.constant 0 : index
    %24 = vector.load %arg1[%c72, %c0_7] : memref<80x32xf32, #tpu.memory_space<vmem>>, vector<1x32xf32>
    %c73 = arith.constant 73 : index
    %c0_8 = arith.constant 0 : index
    %25 = vector.load %arg1[%c73, %c0_8] : memref<80x32xf32, #tpu.memory_space<vmem>>, vector<1x32xf32>
    %cst_9 = arith.constant 9.99999974E-6 : f32
    %26 = vector.broadcast %cst_9 : f32 to vector<8x1xf32>
    %27 = arith.addf %23, %26 : vector<8x1xf32>
    %28 = math.rsqrt %27 : vector<8x1xf32>
    %29 = vector.broadcast %28 : vector<8x1xf32> to vector<8x32xf32>
    %30 = arith.mulf %18, %29 : vector<8x32xf32>
    %31 = vector.broadcast %24 : vector<1x32xf32> to vector<8x32xf32>
    %32 = arith.mulf %30, %31 : vector<8x32xf32>
    %33 = vector.broadcast %25 : vector<1x32xf32> to vector<8x32xf32>
    %34 = arith.addf %32, %33 : vector<8x32xf32>
    %c0_10 = arith.constant 0 : index
    %c0_11 = arith.constant 0 : index
    %35 = vector.load %arg2[%c0_10, %c0_11] : memref<40x32xf32, #tpu.memory_space<vmem>>, vector<32x32xf32>
    %c32 = arith.constant 32 : index
    %c0_12 = arith.constant 0 : index
    %36 = vector.load %arg2[%c32, %c0_12] : memref<40x32xf32, #tpu.memory_space<vmem>>, vector<1x32xf32>
    %cst_13 = arith.constant dense<0.000000e+00> : vector<8x32xf32>
    %37 = tpu.matmul %34, %35, %cst_13 {dimension_numbers = #tpu.dot_dimension_numbers<[1], [0], [0], [1], [0, 0, 1, 1], [], []>} : vector<8x32xf32>, vector<32x32xf32>, vector<8x32xf32> -> vector<8x32xf32>
    %38 = vector.broadcast %36 : vector<1x32xf32> to vector<8x32xf32>
    %39 = arith.addf %37, %38 : vector<8x32xf32>
    %c0_14 = arith.constant 0 : index
    %c0_15 = arith.constant 0 : index
    %40 = vector.load %arg3[%c0_14, %c0_15] : memref<8x32xf32, #tpu.memory_space<vmem>>, vector<8x32xf32>
    tpu.vector_store %arg3[%c0_14, %c0_15], %39 {strides = array<i32>} : memref<8x32xf32, #tpu.memory_space<vmem>>, vector<8x32xf32>,
    return
  }
}

</mosaic_0001>

<llo_original>
// kernel: encode_prompt.1
$region0: #{encode_prompt.1}
  #allocation0 [shape = 'u32[]', space=smem, size = 0x4, offset = 0x4, fixed_abs, tag = 'smem constant byte address 0x4 - core index']
  #allocation1 [shape = 'u32[144,128]{1,0:T(1,128)}', space=vmem, size = 0x12000, scoped, tag = 'internal scratch']
  %s0 = inlined_call_operand.vmem [shape: s32[8,1], index: 0, kind: input, shape index: {}]
  %s1 = inlined_call_operand.vmem [shape: f32[80,32], index: 1, kind: input, shape index: {}]
  %s2 = inlined_call_operand.vmem [shape: f32[40,32], index: 2, kind: input, shape index: {}]
  %s3 = inlined_call_operand.hbm [shape: f32[8,32], index: 3, kind: output, shape index: {}]
  %s4 = sld [smem:[#allocation0]]
  $region22: #{encode_prompt.1} parent=0
    _
  %s6 = ssub.s32 1, %s4
  %s7 = scalar_select 0, %s6, %s4
  $region1: #{encode_prompt.1} parent=0
    #allocation2 [shape = 'u8[4096]{0}', space=vmem, size = 0x1000, scoped, tag = 'output window, operand 0, single buffered']
    #allocation3 [shape = 's32[1]{0}', space=sflag, size = 0x4, scoped, tag = 'scoped memory for encode_prompt.1']
    %8 = vsyncpa [#allocation3], 0
    // Predicated region
    $region2: #{encode_prompt.1} parent=1 // pred_check
      _
    $region3: #{encode_prompt.1} parent=1 // pred_check_branch
      %10 = sbr.rel (0) target = $region5
    $region4: #{encode_prompt.1} parent=1 // pred_region
      _
    $region5: #{encode_prompt.1} parent=1 // pred_fallthru
      _
    // Predicated region
    $region6: #{encode_prompt.1} parent=1 // pred_check
      _
    $region7: #{encode_prompt.1} parent=1 // pred_check_branch
      %12 = sbr.rel (0) target = $region9
    $region8: #{encode_prompt.1} parent=1 // pred_region
      _
    $region9: #{encode_prompt.1} parent=1 // pred_fallthru
      _
    // Predicated region
    $region10: #{encode_prompt.1} parent=1 // pred_check
      _
    $region11: #{encode_prompt.1} parent=1 // pred_check_branch
      %14 = sbr.rel (0) target = $region13
    $region12: #{encode_prompt.1} parent=1 // pred_region
      _
    $region13: #{encode_prompt.1} parent=1 // pred_fallthru
      _
    %v15 = vld [vmem:[%s0] sm:$0xff]
    %v16 = vlaneseq
    %v17 = vand.u32 %v16, 127
    %v18 = vlaneseq
    %v19 = vshrl.u32 %v18, 7
    %20 = vset.pattern.permute.xlu0 0
    %21 = vperm.xlu0 %20, %v15
    %v22 = vpop.permute.xlu0 %21
    %vm23 = vcmp.eq.s32.totalorder %v17, %v22
    %v24 = vadd.s32 %v19, 64
    %vm25 = vcmp.eq.s32.totalorder %v17, %v24
    %vm26 = vmor %vm23, %vm25
    %v27 = vsel %vm26, 1, 0
    %v28 = vcvt.s32.f32 %v27
    %v29 = vld [vmem:[%s1] sm:$0xff]
    %v30 = vld [vmem:[%s1 + $0x8] sm:$0xff]
    %v31 = vld [vmem:[%s1 + $0x10] sm:$0xff]
    %v32 = vld [vmem:[%s1 + $0x18] sm:$0xff]
    %v33 = vld [vmem:[%s1 + $0x20] sm:$0xff]
    %v34 = vld [vmem:[%s1 + $0x28] sm:$0xff]
    %v35 = vld [vmem:[%s1 + $0x30] sm:$0xff]
    %v36 = vld [vmem:[%s1 + $0x38] sm:$0xff]
    %v37 = vld [vmem:[%s1 + $0x40] sm:$0xff]
    %vm38 = vcmask 588800
    %v40 = vsel %vm38, %v28, 0
    %42 = vmatprep.subr.mxu0 0.0
    %43 = vmatpush1.msra.mxu0 %v29
    %44 = vmatprep.subr.mxu0 0.0
    %45 = vmatpush1.msra.mxu0 %v30
    %46 = vmatprep.subr.mxu0 0.0
    %47 = vmatpush1.msra.mxu0 %v31
    %48 = vmatprep.subr.mxu0 0.0
    %49 = vmatpush1.msra.mxu0 %v32
    %50 = vmatprep.subr.mxu0 0.0
    %51 = vmatpush1.msra.mxu0 %v33
    %52 = vmatprep.subr.mxu0 0.0
    %53 = vmatpush1.msra.mxu0 %v34
    %54 = vmatprep.subr.mxu0 0.0
    %55 = vmatpush1.msra.mxu0 %v35
    %56 = vmatprep.subr.mxu0 0.0
    %57 = vmatpush1.msra.mxu0 %v36
    %58 = vmatprep.subr.mxu0 0.0
    %59 = vmatpush1.msra.mxu0 %v37
    %60 = vmatprep.subr.mxu0 0.0
    %61 = vmatpush1.msra.mxu0 0.0
    %62 = vmatprep.subr.mxu0 0.0
    %63 = vmatpush1.msra.mxu0 0.0
    %64 = vmatprep.subr.mxu0 0.0
    %65 = vmatpush1.msra.mxu0 0.0
    %66 = vmatprep.subr.mxu0 0.0
    %67 = vmatpush1.msra.mxu0 0.0
    %68 = vmatprep.subr.mxu0 0.0
    %69 = vmatpush1.msra.mxu0 0.0
    %70 = vmatprep.subr.mxu0 0.0
    %71 = vmatpush1.msra.mxu0 0.0
    %72 = vmatprep.subr.mxu0 0.0
    %73 = vmatpush1.msra.mxu0 0.0
    %74 = vmatprep.subr.mxu0 0.0
    %75 = vmatpush1.msra.mxu0 0.0
    %76 = vmatprep.subr.mxu0 0.0
    %77 = vmatpush1.msra.mxu0 0.0
    %78 = vmatprep.subr.mxu0 0.0
    %79 = vmatpush1.msra.mxu0 0.0
    %80 = vmatprep.subr.mxu0 0.0
    %81 = vmatpush1.msra.mxu0 0.0
    %82 = vmatprep.subr.mxu0 0.0
    %83 = vmatpush1.msra.mxu0 0.0
    %84 = vmatprep.subr.mxu0 0.0
    %85 = vmatpush1.msra.mxu0 0.0
    %86 = vmatprep.subr.mxu0 0.0
    %87 = vmatpush1.msra.mxu0 0.0
    %88 = vmatprep.subr.mxu0 0.0
    %89 = vmatpush1.msra.mxu0 0.0
    %90 = vmatprep.subr.mxu0 0.0
    %91 = vmatpush1.msra.mxu0 0.0
    %92 = vmatprep.subr.mxu0 0.0
    %93 = vmatpush1.msra.mxu0 0.0
    %94 = vmatprep.subr.mxu0 0.0
    %95 = vmatpush1.msra.mxu0 0.0
    %96 = vmatprep.subr.mxu0 0.0
    %97 = vmatpush1.msra.mxu0 0.0
    %98 = vmatprep.subr.mxu0 0.0
    %99 = vmatpush1.msra.mxu0 0.0
    %100 = vmatprep.subr.mxu0 0.0
    %101 = vmatpush1.msra.mxu0 0.0
    %102 = vmatprep.subr.mxu0 0.0
    %103 = vmatpush1.msra.mxu0 0.0
    %104 = vmatprep.subr.mxu0 0.0
    %105 = vmatpush1.msra.mxu0 0.0
    %106 = vmatprep.mubr.f32.mxu0 0.0
    %107 = vmatmul.mubr.f32.gmra.mrb[0].mxu0 %v40
    %v108 = vpop.f32.mrb[0].mxu0
    %v109 = vadd.f32 0.0, %v108
    %v110 = vpop.f32.mrb[0].mxu0
    %111 = vdwg.mxu0
    %vm112 = vcmask 261120
    %v113 = vsel %vm112, %v109, 0.0
    %114 = vadd.xlane.f32.xlu0 %v113
    %v115 = vpop.xlane.xlu0 %114
    %v116 = vrcp.pop 32.0
    %v117 = vmul.f32 %v115, %v116
    %v118 = vsub.f32 %v109, %v117
    %v119 = vmul.f32 %v118, %v118
    %v120 = vsel %vm112, %v119, 0.0
    %121 = vadd.xlane.f32.xlu0 %v120
    %v122 = vpop.xlane.xlu0 %121
    %v123 = vmul.f32 %v122, %v116
    %v124 = vld [vmem:[%s1 + $0x48] sm:$0x1]
    %v125 = vld [vmem:[%s1 + $0x49] sm:$0x1]
    %v126 = vadd.f32 %v123, 1e-05
    %v127 = vrsqrt.pop %v126
    %v128 = vmul.f32 %v118, %v127
    %v129 = vlaneseq
    %v130 = vshrl.u32 %v129, 7
    %v131 = vsub.s32 0, %v130
    %v132 = vrot.slane %v124, %v131
    %v133 = vmul.f32 %v128, %v132
    %v134 = vlaneseq
    %v135 = vshrl.u32 %v134, 7
    %v136 = vsub.s32 0, %v135
    %v137 = vrot.slane %v125, %v136
    %v138 = vadd.f32 %v133, %v137
    %v139 = vld [vmem:[%s2] sm:$0xff]
    %v140 = vld [vmem:[%s2 + $0x8] sm:$0xff]
    %v141 = vld [vmem:[%s2 + $0x10] sm:$0xff]
    %v142 = vld [vmem:[%s2 + $0x18] sm:$0xff]
    %v143 = vld [vmem:[%s2 + $0x20] sm:$0x1]
    %v144 = vlaneseq
    %v145 = vshrl.u32 %v144, 7
    %v146 = vsub.s32 0, %v145
    %v147 = vrot.slane %v143, %v146
    %v149 = vsel %vm112, %v138, 0
    %151 = vmatprep.subr.mxu0 0.0
    %152 = vmatpush1.msra.mxu0 %v139
    %153 = vmatprep.subr.mxu0 0.0
    %154 = vmatpush1.msra.mxu0 %v140
    %155 = vmatprep.subr.mxu0 0.0
    %156 = vmatpush1.msra.mxu0 %v141
    %157 = vmatprep.subr.mxu0 0.0
    %158 = vmatpush1.msra.mxu0 %v142
    %159 = vmatprep.subr.mxu0 0.0
    %160 = vmatpush1.msra.mxu0 0.0
    %161 = vmatprep.subr.mxu0 0.0
    %162 = vmatpush1.msra.mxu0 0.0
    %163 = vmatprep.subr.mxu0 0.0
    %164 = vmatpush1.msra.mxu0 0.0
    %165 = vmatprep.subr.mxu0 0.0
    %166 = vmatpush1.msra.mxu0 0.0
    %167 = vmatprep.subr.mxu0 0.0
    %168 = vmatpush1.msra.mxu0 0.0
    %169 = vmatprep.subr.mxu0 0.0
    %170 = vmatpush1.msra.mxu0 0.0
    %171 = vmatprep.subr.mxu0 0.0
    %172 = vmatpush1.msra.mxu0 0.0
    %173 = vmatprep.subr.mxu0 0.0
    %174 = vmatpush1.msra.mxu0 0.0
    %175 = vmatprep.subr.mxu0 0.0
    %176 = vmatpush1.msra.mxu0 0.0
    %177 = vmatprep.subr.mxu0 0.0
    %178 = vmatpush1.msra.mxu0 0.0
    %179 = vmatprep.subr.mxu0 0.0
    %180 = vmatpush1.msra.mxu0 0.0
    %181 = vmatprep.subr.mxu0 0.0
    %182 = vmatpush1.msra.mxu0 0.0
    %183 = vmatprep.subr.mxu0 0.0
    %184 = vmatpush1.msra.mxu0 0.0
    %185 = vmatprep.subr.mxu0 0.0
    %186 = vmatpush1.msra.mxu0 0.0
    %187 = vmatprep.subr.mxu0 0.0
    %188 = vmatpush1.msra.mxu0 0.0
    %189 = vmatprep.subr.mxu0 0.0
    %190 = vmatpush1.msra.mxu0 0.0
    %191 = vmatprep.subr.mxu0 0.0
    %192 = vmatpush1.msra.mxu0 0.0
    %193 = vmatprep.subr.mxu0 0.0
    %194 = vmatpush1.msra.mxu0 0.0
    %195 = vmatprep.subr.mxu0 0.0
    %196 = vmatpush1.msra.mxu0 0.0
    %197 = vmatprep.subr.mxu0 0.0
    %198 = vmatpush1.msra.mxu0 0.0
    %199 = vmatprep.subr.mxu0 0.0
    %200 = vmatpush1.msra.mxu0 0.0
    %201 = vmatprep.subr.mxu0 0.0
    %202 = vmatpush1.msra.mxu0 0.0
    %203 = vmatprep.subr.mxu0 0.0
    %204 = vmatpush1.msra.mxu0 0.0
    %205 = vmatprep.subr.mxu0 0.0
    %206 = vmatpush1.msra.mxu0 0.0
    %207 = vmatprep.subr.mxu0 0.0
    %208 = vmatpush1.msra.mxu0 0.0
    %209 = vmatprep.subr.mxu0 0.0
    %210 = vmatpush1.msra.mxu0 0.0
    %211 = vmatprep.subr.mxu0 0.0
    %212 = vmatpush1.msra.mxu0 0.0
    %213 = vmatprep.subr.mxu0 0.0
    %214 = vmatpush1.msra.mxu0 0.0
    %215 = vmatprep.mubr.f32.mxu0 0.0
    %216 = vmatmul.mubr.f32.gmra.mrb[0].mxu0 %v149
    %v217 = vpop.f32.mrb[0].mxu0
    %v218 = vadd.f32 %v147, %v217
    %v219 = vpop.f32.mrb[0].mxu0
    %220 = vdwg.mxu0
    %221 = vst.msk [vmem:[#allocation2] sm:$0xff] %vm112, %v218
    // Predicated region
    $region14: #{encode_prompt.1} parent=1 // pred_check
      _
    $region15: #{encode_prompt.1} parent=1 // pred_check_branch
      %223 = sbr.rel (0) target = $region17
    $region16: #{encode_prompt.1} parent=1 // pred_region
      %s225 = ssub.s32 128, 128
      %226 = vsyncadd [#allocation3], %s225
      %s228 = sshll.u32 [#allocation2], 4
      %s229 = int_to_ptr.vmem [resolvable:$true] %s228
      %231 = dma.vmem_to_hbm [thread:$0]  %s229, 128, %s3, [#allocation3]
    $region17: #{encode_prompt.1} parent=1 // pred_fallthru
      _
    // Predicated region
    $region18: #{encode_prompt.1} parent=1 // pred_check
      _
    $region19: #{encode_prompt.1} parent=1 // pred_check_branch
      %233 = sbr.rel (0) target = $region21
    $region20: #{encode_prompt.1} parent=1 // pred_region
      %234 = dma.done [#allocation3], 128
    $region21: #{encode_prompt.1} parent=1 // pred_fallthru
      _
    %235 = vsyncpa [#allocation3], 1

</llo_original>
